<compile_context>
chip_gen: v6e
topology: v6e:2x2x1
jax: 0.10.0
libtpu: 0.0.40
codegen_flags: <defaults>
</compile_context>

<pallas_src>
import jax
import jax.numpy as jnp
from jax.experimental import pallas as pl
from jax.experimental.pallas import tpu as pltpu


# ----------------------------- Pallas kernel ------------------------------ #
def _fused_enc_cls_kernel(x_ref, w1_ref, w_ref, b_ref, out_ref):
    # In-kernel bf16 cast of x (a few vregs of VPU work, free slack here).
    x = x_ref[...].astype(jnp.bfloat16)
    # encoder layer 1: (TB, T)bf16 @ (T, H)bf16 -> f32 acc; bias + ReLU in f32.
    h = jnp.dot(x, w1_ref[...], preferred_element_type=jnp.float32)
    h = jnp.maximum(h + b_ref[0], 0.0)
    # encoder layer 2: cast activation back to bf16 for the MXU.
    e = jnp.dot(h.astype(jnp.bfloat16), w_ref[0],
                preferred_element_type=jnp.float32)
    e = jnp.maximum(e + b_ref[1], 0.0)
    # classifier head: (TB, D)bf16 @ (D, C_pad)bf16 -> f32 logits (lane-dense).
    logits = jnp.dot(e.astype(jnp.bfloat16), w_ref[1],
                     preferred_element_type=jnp.float32)
    out_ref[...] = (logits + b_ref[2]).astype(out_ref.dtype)


# ---------------------- one-time parameter preparation --------------------- #
def prepare_params(params):
    """Hoisted out of the per-call path: bf16 casts, lane padding, packing.

    Returns a dict the caller should cache and reuse for every forward call.
    """
    w1, b1, w2, b2, wc, bc = params
    T, H = w1.shape
    D = w2.shape[1]
    C = wc.shape[1]
    C_pad = ((C + 127) // 128) * 128
    # Packing w2/wc and b1/b2/bc into single stacked arrays (fewer DMA
    # descriptors) requires H == D == C_pad, true for this synthetic config.
    # TODO(synk): general H != D != C_pad case needs per-tensor specs or padding to a common width.
    assert H == D == C_pad, (H, D, C_pad)

    w1_bf = w1.astype(jnp.bfloat16)
    wc_pad = jnp.zeros((D, C_pad), jnp.bfloat16).at[:, :C].set(
        wc.astype(jnp.bfloat16))
    w_stack = jnp.stack([w2.astype(jnp.bfloat16), wc_pad])      # (2, H, C_pad) bf16
    b_stack = jnp.zeros((3, 1, C_pad), jnp.float32)
    b_stack = b_stack.at[0, :, :H].set(b1.astype(jnp.float32))
    b_stack = b_stack.at[1, :, :D].set(b2.astype(jnp.float32))
    b_stack = b_stack.at[2, :, :C].set(bc.astype(jnp.float32))
    return {"w1": w1_bf, "w_stack": w_stack, "b_stack": b_stack,
            "T": T, "H": H, "D": D, "C": C, "C_pad": C_pad}


# ------------------------------ JAX wrapper -------------------------------- #
def audio_encoder_classifier(x, prepared, *, tile_b=None, slice_output=True):
    """x: (B, T) float32 raw audio features.

    Returns (B, 1, C) f32 logits, or the lane-padded (B, 1, C_pad) slab when
    slice_output=False (lets the consumer fold the slice into its first op and
    avoid an extra XLA copy in latency-bound serving).
    """
    B, T = x.shape
    assert T == prepared["T"], (T, prepared["T"])
    H, C, C_pad = prepared["H"], prepared["C"], prepared["C_pad"]

    # One fat grid step for small B; cap at 128 rows when B grows so the live
    # f32 h/e activations stay within the vreg file (also = v5e MXU height).
    # Do NOT split the batch axis for megacore below ~32 rows.
    if tile_b is None:
        tile_b = min(B, 128)
    assert B % tile_b == 0 and tile_b % 8 == 0, (B, tile_b)

    out_pad = pl.pallas_call(
        _fused_enc_cls_kernel,
        out_shape=jax.ShapeDtypeStruct((B, C_pad), jnp.float32),
        grid_spec=pltpu.PrefetchScalarGridSpec(
            num_scalar_prefetch=0,
            grid=(B // tile_b,),
            in_specs=[
                pl.BlockSpec((tile_b, T), lambda i: (i, 0)),       # x f32 (cast in-kernel)
                pl.BlockSpec((T, H), lambda i: (0, 0)),            # w1 bf16 (resident)
                pl.BlockSpec((2, H, C_pad), lambda i: (0, 0, 0)),  # [w2, wc_pad] bf16
                pl.BlockSpec((3, 1, C_pad), lambda i: (0, 0, 0)),  # [b1, b2, bc_pad] f32
            ],
            out_specs=pl.BlockSpec((tile_b, C_pad), lambda i: (i, 0)),
        ),
        compiler_params=pltpu.CompilerParams(
            dimension_semantics=("parallel",)),
        # TODO(synk): for realistic encoder sizes (T, H, D >= 1024): K-tile w1 with an
        # f32 VMEM accumulator (pl.when init/finalize, reduction axis last,
        # "arbitrary"), single-buffer the constant-index weight specs via
        # pipeline_mode=pl.Buffered(1), and set vmem_limit_bytes (v7x: 64 MiB VMEM).
    )(x, prepared["w1"], prepared["w_stack"], prepared["b_stack"])

    # unsqueeze(dim=1) is a free reshape; the [:, :C] slice is an extra copy.
    out_pad = out_pad.reshape(B, 1, C_pad)
    if slice_output:
        return out_pad[:, :, :C]
    return out_pad


# Pure-JAX f32 reference for correctness check.
def _reference(x, params):
    w1, b1, w2, b2, wc, bc = params
    h = jnp.maximum(x @ w1 + b1, 0.0)
    e = jnp.maximum(h @ w2 + b2, 0.0)
    e = e[:, None, :]                      # unsqueeze(dim=1)
    return e @ wc + bc                     # (B, 1, C)


# --------------------------------- main ------------------------------------ #
if __name__ == "__main__":
    B, T, H, D, C = 16, 256, 128, 128, 16   # small, TPU-tile-friendly shapes

    key = jax.random.PRNGKey(0)
    kx, k1, k2, k3, k4, k5, k6 = jax.random.split(key, 7)

    x = jax.random.normal(kx, (B, T), dtype=jnp.float32)

    # Deterministic synthetic parameters (scaled to keep activations sane).
    w1 = jax.random.normal(k1, (T, H), dtype=jnp.float32) * (1.0 / T) ** 0.5
    b1 = jax.random.normal(k2, (1, H), dtype=jnp.float32) * 0.01
    w2 = jax.random.normal(k3, (H, D), dtype=jnp.float32) * (1.0 / H) ** 0.5
    b2 = jax.random.normal(k4, (1, D), dtype=jnp.float32) * 0.01
    wc = jax.random.normal(k5, (D, C), dtype=jnp.float32) * (1.0 / D) ** 0.5
    bc = jax.random.normal(k6, (1, C), dtype=jnp.float32) * 0.01
    params = (w1, b1, w2, b2, wc, bc)

    # One-time weight prep (cast + pad + pack); cached and reused per call.
    prepared = prepare_params(params)

    out = audio_encoder_classifier(x, prepared)
    out = jax.block_until_ready(out)

    ref = _reference(x, params)
    assert out.shape == (B, 1, C), out.shape
    # bf16 MXU operands with f32 accumulation: loosen tolerance vs f32 reference.
    assert jnp.allclose(out, ref, atol=5e-2, rtol=5e-2), (
        "mismatch vs reference; max abs diff = "
        f"{float(jnp.max(jnp.abs(out - ref)))}")

    print("KERNEL_OK")
</pallas_src>

<mosaic_0001>
module attributes {stable_mosaic.version = 11 : i64} {
  func.func @_fused_enc_cls_kernel(%arg0: i32, %arg1: memref<16x256xf32, #tpu.memory_space<vmem>>, %arg2: memref<256x128xbf16, #tpu.memory_space<vmem>>, %arg3: memref<2x128x128xbf16, #tpu.memory_space<vmem>>, %arg4: memref<3x1x128xf32, #tpu.memory_space<vmem>>, %arg5: memref<16x128xf32, #tpu.memory_space<vmem>>) attributes {dimension_semantics = [#tpu.dimension_semantics<parallel>], iteration_bounds = array<i64: 1>, scalar_prefetch = 0 : i64, scratch_operands = 0 : i64, tpu.core_type = #tpu.core_type<tc>, window_params = [{transform_indices = @transform_0, window_bounds = array<i64: 16, 256>}, {pipeline_mode = #tpu.pipeline_mode<synchronous>, transform_indices = @transform_1, window_bounds = array<i64: 256, 128>}, {pipeline_mode = #tpu.pipeline_mode<synchronous>, transform_indices = @transform_2, window_bounds = array<i64: 2, 128, 128>}, {pipeline_mode = #tpu.pipeline_mode<synchronous>, transform_indices = @transform_3, window_bounds = array<i64: 3, 1, 128>}, {transform_indices = @transform_4, window_bounds = array<i64: 16, 128>}]} {
    %c0 = arith.constant 0 : index
    %c0_0 = arith.constant 0 : index
    %0 = vector.load %arg1[%c0, %c0_0] : memref<16x256xf32, #tpu.memory_space<vmem>>, vector<16x256xf32>
    %1 = arith.truncf %0 : vector<16x256xf32> to vector<16x256xbf16>
    %c0_1 = arith.constant 0 : index
    %c0_2 = arith.constant 0 : index
    %2 = vector.load %arg2[%c0_1, %c0_2] : memref<256x128xbf16, #tpu.memory_space<vmem>>, vector<256x128xbf16>
    %cst = arith.constant dense<0.000000e+00> : vector<16x128xf32>
    %3 = tpu.matmul %1, %2, %cst {dimension_numbers = #tpu.dot_dimension_numbers<[1], [0], [0], [1], [0, 0, 1, 1], [], []>} : vector<16x256xbf16>, vector<256x128xbf16>, vector<16x128xf32> -> vector<16x128xf32>
    %c0_3 = arith.constant 0 : index
    %c0_4 = arith.constant 0 : index
    %c0_5 = arith.constant 0 : index
    %4 = vector.load %arg4[%c0_3, %c0_4, %c0_5] : memref<3x1x128xf32, #tpu.memory_space<vmem>>, vector<1x1x128xf32>
    %5 = vector.shape_cast %4 : vector<1x1x128xf32> to vector<1x128xf32>
    %6 = vector.broadcast %5 : vector<1x128xf32> to vector<16x128xf32>
    %7 = arith.addf %3, %6 : vector<16x128xf32>
    %cst_6 = arith.constant 0.000000e+00 : f32
    %8 = vector.broadcast %cst_6 : f32 to vector<16x128xf32>
    %9 = arith.maximumf %7, %8 : vector<16x128xf32>
    %10 = arith.truncf %9 : vector<16x128xf32> to vector<16x128xbf16>
    %c0_7 = arith.constant 0 : index
    %c0_8 = arith.constant 0 : index
    %c0_9 = arith.constant 0 : index
    %11 = vector.load %arg3[%c0_7, %c0_8, %c0_9] : memref<2x128x128xbf16, #tpu.memory_space<vmem>>, vector<1x128x128xbf16>
    %12 = vector.shape_cast %11 : vector<1x128x128xbf16> to vector<128x128xbf16>
    %cst_10 = arith.constant dense<0.000000e+00> : vector<16x128xf32>
    %13 = tpu.matmul %10, %12, %cst_10 {dimension_numbers = #tpu.dot_dimension_numbers<[1], [0], [0], [1], [0, 0, 1, 1], [], []>} : vector<16x128xbf16>, vector<128x128xbf16>, vector<16x128xf32> -> vector<16x128xf32>
    %c1 = arith.constant 1 : index
    %c0_11 = arith.constant 0 : index
    %c0_12 = arith.constant 0 : index
    %14 = vector.load %arg4[%c1, %c0_11, %c0_12] : memref<3x1x128xf32, #tpu.memory_space<vmem>>, vector<1x1x128xf32>
    %15 = vector.shape_cast %14 : vector<1x1x128xf32> to vector<1x128xf32>
    %16 = vector.broadcast %15 : vector<1x128xf32> to vector<16x128xf32>
    %17 = arith.addf %13, %16 : vector<16x128xf32>
    %cst_13 = arith.constant 0.000000e+00 : f32
    %18 = vector.broadcast %cst_13 : f32 to vector<16x128xf32>
    %19 = arith.maximumf %17, %18 : vector<16x128xf32>
    %20 = arith.truncf %19 : vector<16x128xf32> to vector<16x128xbf16>
    %c1_14 = arith.constant 1 : index
    %c0_15 = arith.constant 0 : index
    %c0_16 = arith.constant 0 : index
    %21 = vector.load %arg3[%c1_14, %c0_15, %c0_16] : memref<2x128x128xbf16, #tpu.memory_space<vmem>>, vector<1x128x128xbf16>
    %22 = vector.shape_cast %21 : vector<1x128x128xbf16> to vector<128x128xbf16>
    %cst_17 = arith.constant dense<0.000000e+00> : vector<16x128xf32>
    %23 = tpu.matmul %20, %22, %cst_17 {dimension_numbers = #tpu.dot_dimension_numbers<[1], [0], [0], [1], [0, 0, 1, 1], [], []>} : vector<16x128xbf16>, vector<128x128xbf16>, vector<16x128xf32> -> vector<16x128xf32>
    %c2 = arith.constant 2 : index
    %c0_18 = arith.constant 0 : index
    %c0_19 = arith.constant 0 : index
    %24 = vector.load %arg4[%c2, %c0_18, %c0_19] : memref<3x1x128xf32, #tpu.memory_space<vmem>>, vector<1x1x128xf32>
    %25 = vector.shape_cast %24 : vector<1x1x128xf32> to vector<1x128xf32>
    %26 = vector.broadcast %25 : vector<1x128xf32> to vector<16x128xf32>
    %27 = arith.addf %23, %26 : vector<16x128xf32>
    %c0_20 = arith.constant 0 : index
    %c0_21 = arith.constant 0 : index
    %28 = vector.load %arg5[%c0_20, %c0_21] : memref<16x128xf32, #tpu.memory_space<vmem>>, vector<16x128xf32>
    tpu.vector_store %arg5[%c0_20, %c0_21], %27 {strides = array<i32>} : memref<16x128xf32, #tpu.memory_space<vmem>>, vector<16x128xf32>,
    return
  }
  func.func @transform_0(%arg0: i32) -> (i32, i32) {
    %c0_i32 = arith.constant 0 : i32
    %c0_i32_0 = arith.constant 0 : i32
    return %arg0, %c0_i32 : i32, i32
  }
  func.func @transform_1(%arg0: i32) -> (i32, i32) {
    %c0_i32 = arith.constant 0 : i32
    %c0_i32_0 = arith.constant 0 : i32
    %c0_i32_1 = arith.constant 0 : i32
    return %c0_i32, %c0_i32_0 : i32, i32
  }
  func.func @transform_2(%arg0: i32) -> (i32, i32, i32) {
    %c0_i32 = arith.constant 0 : i32
    %c0_i32_0 = arith.constant 0 : i32
    %c0_i32_1 = arith.constant 0 : i32
    %c0_i32_2 = arith.constant 0 : i32
    return %c0_i32, %c0_i32_0, %c0_i32_1 : i32, i32, i32
  }
  func.func @transform_3(%arg0: i32) -> (i32, i32, i32) {
    %c0_i32 = arith.constant 0 : i32
    %c0_i32_0 = arith.constant 0 : i32
    %c0_i32_1 = arith.constant 0 : i32
    %c0_i32_2 = arith.constant 0 : i32
    return %c0_i32, %c0_i32_0, %c0_i32_1 : i32, i32, i32
  }
  func.func @transform_4(%arg0: i32) -> (i32, i32) {
    %c0_i32 = arith.constant 0 : i32
    %c0_i32_0 = arith.constant 0 : i32
    return %arg0, %c0_i32 : i32, i32
  }
}

</mosaic_0001>

<llo_original>
// kernel: tpu_custom_call.1
$region0: #{tpu_custom_call.1}
  #allocation0 [shape = 'u32[]', space=smem, size = 0x4, offset = 0x4, fixed_abs, tag = 'smem constant byte address 0x4 - core index']
  #allocation1 [shape = 'u32[144,128]{1,0:T(1,128)}', space=vmem, size = 0x12000, scoped, tag = 'internal scratch']
  %s0 = inlined_call_operand.hbm [shape: f32[16,256], index: 0, kind: input, shape index: {}]
  %s1 = inlined_call_operand.hbm [shape: bf16[256,128], index: 1, kind: input, shape index: {}]
  %s2 = inlined_call_operand.hbm [shape: bf16[2,128,128], index: 2, kind: input, shape index: {}]
  %s3 = inlined_call_operand.vmem [shape: f32[3,1,128], index: 3, kind: input, shape index: {}]
  %s4 = inlined_call_operand.hbm [shape: f32[16,128], index: 4, kind: output, shape index: {}]
  %s5 = sld [smem:[#allocation0]]
  $region38: #{tpu_custom_call.1} parent=0
    _
  %s7 = ssub.s32 1, %s5
  %s8 = scalar_select 0, %s7, %s5
  $region1: #{tpu_custom_call.1} parent=0
    #allocation2 [shape = 'u8[16384]{0}', space=vmem, size = 0x4000, scoped, tag = 'input window, operand 0, single buffered']
    #allocation3 [shape = 's32[1]{0}', space=sflag, size = 0x4, scoped, tag = 'scoped memory for tpu_custom_call.1']
    #allocation4 [shape = 's32[1]{0}', space=sflag, size = 0x4, scoped, tag = 'scoped memory for tpu_custom_call.1']
    #allocation5 [shape = 'u8[65536]{0}', space=vmem, size = 0x10000, scoped, tag = 'input window, operand 1, single buffered']
    #allocation6 [shape = 's32[1]{0}', space=sflag, size = 0x4, scoped, tag = 'scoped memory for tpu_custom_call.1']
    #allocation7 [shape = 'u8[65536]{0}', space=vmem, size = 0x10000, scoped, tag = 'input window, operand 2, single buffered']
    #allocation8 [shape = 'u8[8192]{0}', space=vmem, size = 0x2000, scoped, tag = 'output window, operand 0, single buffered']
    %9 = vsyncpa [#allocation3], 0
    %10 = vsyncpa [#allocation6], 0
    %11 = vsyncpa [#allocation4], 0
    // Predicated region
    $region2: #{tpu_custom_call.1} parent=1 // pred_check
      _
    $region3: #{tpu_custom_call.1} parent=1 // pred_check_branch
      %13 = sbr.rel (0) target = $region5
    $region4: #{tpu_custom_call.1} parent=1 // pred_region
      %s15 = ssub.s32 512, 512
      %16 = vsyncadd [#allocation3], %s15
      %s17 = sshll.u32 [#allocation2], 4
      %s18 = int_to_ptr.vmem [resolvable:$true] %s17
      %23 = dma.hbm_to_vmem [thread:$0]  %s0, 512, %s18, [#allocation3], 256, 256, 16
    $region5: #{tpu_custom_call.1} parent=1 // pred_fallthru
      _
    // Predicated region
    $region6: #{tpu_custom_call.1} parent=1 // pred_check
      _
    $region7: #{tpu_custom_call.1} parent=1 // pred_check_branch
      %25 = sbr.rel (0) target = $region9
    $region8: #{tpu_custom_call.1} parent=1 // pred_region
      %s27 = ssub.s32 2048, 2048
      %28 = vsyncadd [#allocation6], %s27
      %s29 = sshll.u32 [#allocation5], 4
      %s30 = int_to_ptr.vmem [resolvable:$true] %s29
      %35 = dma.hbm_to_vmem [thread:$0]  %s1, 2048, %s30, [#allocation6], 64, 64, 4
    $region9: #{tpu_custom_call.1} parent=1 // pred_fallthru
      _
    // Predicated region
    $region10: #{tpu_custom_call.1} parent=1 // pred_check
      _
    $region11: #{tpu_custom_call.1} parent=1 // pred_check_branch
      %37 = sbr.rel (0) target = $region13
    $region12: #{tpu_custom_call.1} parent=1 // pred_region
      %s39 = ssub.s32 2048, 2048
      %40 = vsyncadd [#allocation6], %s39
      %s41 = sshll.u32 [#allocation7], 4
      %s42 = int_to_ptr.vmem [resolvable:$true] %s41
      %47 = dma.hbm_to_vmem [thread:$0]  %s2, 2048, %s42, [#allocation6], 64, 64, 4
    $region13: #{tpu_custom_call.1} parent=1 // pred_fallthru
      _
    // Predicated region
    $region14: #{tpu_custom_call.1} parent=1 // pred_check
      _
    $region15: #{tpu_custom_call.1} parent=1 // pred_check_branch
      %49 = sbr.rel (0) target = $region17
    $region16: #{tpu_custom_call.1} parent=1 // pred_region
      _
    $region17: #{tpu_custom_call.1} parent=1 // pred_fallthru
      _
    // Predicated region
    $region18: #{tpu_custom_call.1} parent=1 // pred_check
      _
    $region19: #{tpu_custom_call.1} parent=1 // pred_check_branch
      %51 = sbr.rel (0) target = $region21
    $region20: #{tpu_custom_call.1} parent=1 // pred_region
      %52 = dma.done [#allocation3], 512
    $region21: #{tpu_custom_call.1} parent=1 // pred_fallthru
      _
    // Predicated region
    $region22: #{tpu_custom_call.1} parent=1 // pred_check
      _
    $region23: #{tpu_custom_call.1} parent=1 // pred_check_branch
      %54 = sbr.rel (0) target = $region25
    $region24: #{tpu_custom_call.1} parent=1 // pred_region
      %55 = dma.done [#allocation6], 2048
    $region25: #{tpu_custom_call.1} parent=1 // pred_fallthru
      _
    // Predicated region
    $region26: #{tpu_custom_call.1} parent=1 // pred_check
      _
    $region27: #{tpu_custom_call.1} parent=1 // pred_check_branch
      %57 = sbr.rel (0) target = $region29
    $region28: #{tpu_custom_call.1} parent=1 // pred_region
      %58 = dma.done [#allocation6], 2048
    $region29: #{tpu_custom_call.1} parent=1 // pred_fallthru
      _
    %v60 = vld [vmem:[#allocation2] sm:$0xff]
    %v61 = vld [vmem:[#allocation2 + $0x8] sm:$0xff]
    %v62 = vld [vmem:[#allocation2 + $0x10] sm:$0xff]
    %v63 = vld [vmem:[#allocation2 + $0x18] sm:$0xff]
    %v64 = vpack.c.bf16 %v62, %v60
    %v65 = vpack.c.bf16 %v63, %v61
    %v66 = vld [vmem:[#allocation5] sm:$0xf]
    %v67 = vld [vmem:[#allocation5 + $0x4] sm:$0xf]
    %v68 = vld [vmem:[#allocation5 + $0x8] sm:$0xf]
    %v69 = vld [vmem:[#allocation5 + $0xc] sm:$0xf]
    %v70 = vld [vmem:[#allocation5 + $0x10] sm:$0xf]
    %v71 = vld [vmem:[#allocation5 + $0x14] sm:$0xf]
    %v72 = vld [vmem:[#allocation5 + $0x18] sm:$0xf]
    %v73 = vld [vmem:[#allocation5 + $0x1c] sm:$0xf]
    %v74 = vld [vmem:[#allocation5 + $0x20] sm:$0xf]
    %v75 = vld [vmem:[#allocation5 + $0x24] sm:$0xf]
    %v76 = vld [vmem:[#allocation5 + $0x28] sm:$0xf]
    %v77 = vld [vmem:[#allocation5 + $0x2c] sm:$0xf]
    %v78 = vld [vmem:[#allocation5 + $0x30] sm:$0xf]
    %v79 = vld [vmem:[#allocation5 + $0x34] sm:$0xf]
    %v80 = vld [vmem:[#allocation5 + $0x38] sm:$0xf]
    %v81 = vld [vmem:[#allocation5 + $0x3c] sm:$0xf]
    %v82 = vld [vmem:[#allocation5 + $0x40] sm:$0xf]
    %v83 = vld [vmem:[#allocation5 + $0x44] sm:$0xf]
    %v84 = vld [vmem:[#allocation5 + $0x48] sm:$0xf]
    %v85 = vld [vmem:[#allocation5 + $0x4c] sm:$0xf]
    %v86 = vld [vmem:[#allocation5 + $0x50] sm:$0xf]
    %v87 = vld [vmem:[#allocation5 + $0x54] sm:$0xf]
    %v88 = vld [vmem:[#allocation5 + $0x58] sm:$0xf]
    %v89 = vld [vmem:[#allocation5 + $0x5c] sm:$0xf]
    %v90 = vld [vmem:[#allocation5 + $0x60] sm:$0xf]
    %v91 = vld [vmem:[#allocation5 + $0x64] sm:$0xf]
    %v92 = vld [vmem:[#allocation5 + $0x68] sm:$0xf]
    %v93 = vld [vmem:[#allocation5 + $0x6c] sm:$0xf]
    %v94 = vld [vmem:[#allocation5 + $0x70] sm:$0xf]
    %v95 = vld [vmem:[#allocation5 + $0x74] sm:$0xf]
    %v96 = vld [vmem:[#allocation5 + $0x78] sm:$0xf]
    %v97 = vld [vmem:[#allocation5 + $0x7c] sm:$0xf]
    %v98 = vld [vmem:[%s3] sm:$0x1]
    %v100 = vlaneseq
    %v101 = vshrl.u32 %v100, 7
    %v102 = vsub.s32 0, %v101
    %v103 = vrot.slane %v98, %v102
    %v137 = vunpack.c.l.b16 %v66
    %v138 = vunpack.c.l.b16 %v67
    %v139 = vunpack.c.l.b16 %v68
    %v140 = vunpack.c.l.b16 %v69
    %v141 = vunpack.c.l.b16 %v70
    %v142 = vunpack.c.l.b16 %v71
    %v143 = vunpack.c.l.b16 %v72
    %v144 = vunpack.c.l.b16 %v73
    %v145 = vunpack.c.l.b16 %v74
    %v146 = vunpack.c.l.b16 %v75
    %v147 = vunpack.c.l.b16 %v76
    %v148 = vunpack.c.l.b16 %v77
    %v149 = vunpack.c.l.b16 %v78
    %v150 = vunpack.c.l.b16 %v79
    %v151 = vunpack.c.l.b16 %v80
    %v152 = vunpack.c.l.b16 %v81
    %v153 = vunpack.c.l.b16 %v82
    %v154 = vunpack.c.l.b16 %v83
    %v155 = vunpack.c.l.b16 %v84
    %v156 = vunpack.c.l.b16 %v85
    %v157 = vunpack.c.l.b16 %v86
    %v158 = vunpack.c.l.b16 %v87
    %v159 = vunpack.c.l.b16 %v88
    %v160 = vunpack.c.l.b16 %v89
    %v161 = vunpack.c.l.b16 %v90
    %v162 = vunpack.c.l.b16 %v91
    %v163 = vunpack.c.l.b16 %v92
    %v164 = vunpack.c.l.b16 %v93
    %v165 = vunpack.c.l.b16 %v94
    %v166 = vunpack.c.l.b16 %v95
    %v167 = vunpack.c.l.b16 %v96
    %v168 = vunpack.c.l.b16 %v97
    %v169 = vpack.c.b16 %v138, %v137
    %v170 = vpack.c.b16 %v140, %v139
    %v171 = vpack.c.b16 %v142, %v141
    %v172 = vpack.c.b16 %v144, %v143
    %v173 = vpack.c.b16 %v146, %v145
    %v174 = vpack.c.b16 %v148, %v147
    %v175 = vpack.c.b16 %v150, %v149
    %v176 = vpack.c.b16 %v152, %v151
    %v177 = vpack.c.b16 %v154, %v153
    %v178 = vpack.c.b16 %v156, %v155
    %v179 = vpack.c.b16 %v158, %v157
    %v180 = vpack.c.b16 %v160, %v159
    %v181 = vpack.c.b16 %v162, %v161
    %v182 = vpack.c.b16 %v164, %v163
    %v183 = vpack.c.b16 %v166, %v165
    %v184 = vpack.c.b16 %v168, %v167
    %201 = vmatprep.subr.bf16.mxu0 0
    %202 = vmatpush1.bf16.msra.mxu0 %v176
    %203 = vmatprep.subr.bf16.mxu0 0
    %204 = vmatpush1.bf16.msra.mxu0 %v175
    %205 = vmatprep.subr.bf16.mxu0 0
    %206 = vmatpush1.bf16.msra.mxu0 %v174
    %207 = vmatprep.subr.bf16.mxu0 0
    %208 = vmatpush1.bf16.msra.mxu0 %v173
    %209 = vmatprep.subr.bf16.mxu0 0
    %210 = vmatpush1.bf16.msra.mxu0 %v172
    %211 = vmatprep.subr.bf16.mxu0 0
    %212 = vmatpush1.bf16.msra.mxu0 %v171
    %213 = vmatprep.subr.bf16.mxu0 0
    %214 = vmatpush1.bf16.msra.mxu0 %v170
    %215 = vmatprep.subr.bf16.mxu0 0
    %216 = vmatpush1.bf16.msra.mxu0 %v169
    %217 = vmatprep.subr.bf16.mxu0 0
    %218 = vmatpush2.bf16.msra.mxu0 %v184
    %219 = vmatprep.subr.bf16.mxu0 0
    %220 = vmatpush2.bf16.msra.mxu0 %v183
    %221 = vmatprep.subr.bf16.mxu0 0
    %222 = vmatpush2.bf16.msra.mxu0 %v182
    %223 = vmatprep.subr.bf16.mxu0 0
    %224 = vmatpush2.bf16.msra.mxu0 %v181
    %225 = vmatprep.subr.bf16.mxu0 0
    %226 = vmatpush2.bf16.msra.mxu0 %v180
    %227 = vmatprep.subr.bf16.mxu0 0
    %228 = vmatpush2.bf16.msra.mxu0 %v179
    %229 = vmatprep.subr.bf16.mxu0 0
    %230 = vmatpush2.bf16.msra.mxu0 %v178
    %231 = vmatprep.subr.bf16.mxu0 0
    %232 = vmatpush2.bf16.msra.mxu0 %v177
    %233 = vmatprep.mubr.bf16.mxu0 %v65
    %234 = vmatmul.mubr.bf16.gmra.mxu0 %v64
    %v235 = vpop.f32.mrf.mxu0
    %v236 = vadd.f32 %v103, %v235
    %v237 = vpop.f32.mrf.mxu0
    %v238 = vpop.f32.mrf.mxu0
    %v239 = vadd.f32 %v103, %v238
    %v240 = vpop.f32.mrf.mxu0
    %241 = vdwg.mxu0
    %v242 = vmax.f32 %v236, 0.0
    %v243 = vmax.f32 %v239, 0.0
    %v244 = vpack.c.bf16 %v243, %v242
    %v245 = vld [vmem:[#allocation7] sm:$0xf]
    %v246 = vld [vmem:[#allocation7 + $0x4] sm:$0xf]
    %v247 = vld [vmem:[#allocation7 + $0x8] sm:$0xf]
    %v248 = vld [vmem:[#allocation7 + $0xc] sm:$0xf]
    %v249 = vld [vmem:[#allocation7 + $0x10] sm:$0xf]
    %v250 = vld [vmem:[#allocation7 + $0x14] sm:$0xf]
    %v251 = vld [vmem:[#allocation7 + $0x18] sm:$0xf]
    %v252 = vld [vmem:[#allocation7 + $0x1c] sm:$0xf]
    %v253 = vld [vmem:[#allocation7 + $0x20] sm:$0xf]
    %v254 = vld [vmem:[#allocation7 + $0x24] sm:$0xf]
    %v255 = vld [vmem:[#allocation7 + $0x28] sm:$0xf]
    %v256 = vld [vmem:[#allocation7 + $0x2c] sm:$0xf]
    %v257 = vld [vmem:[#allocation7 + $0x30] sm:$0xf]
    %v258 = vld [vmem:[#allocation7 + $0x34] sm:$0xf]
    %v259 = vld [vmem:[#allocation7 + $0x38] sm:$0xf]
    %v260 = vld [vmem:[#allocation7 + $0x3c] sm:$0xf]
    %s261 = scalar_lea.vmem %s3, 1
    %v262 = vld [vmem:[%s261] sm:$0x1]
    %v264 = vlaneseq
    %v265 = vshrl.u32 %v264, 7
    %v266 = vsub.s32 0, %v265
    %v267 = vrot.slane %v262, %v266
    %v285 = vunpack.c.l.b16 %v245
    %v286 = vunpack.c.l.b16 %v246
    %v287 = vunpack.c.l.b16 %v247
    %v288 = vunpack.c.l.b16 %v248
    %v289 = vunpack.c.l.b16 %v249
    %v290 = vunpack.c.l.b16 %v250
    %v291 = vunpack.c.l.b16 %v251
    %v292 = vunpack.c.l.b16 %v252
    %v293 = vunpack.c.l.b16 %v253
    %v294 = vunpack.c.l.b16 %v254
    %v295 = vunpack.c.l.b16 %v255
    %v296 = vunpack.c.l.b16 %v256
    %v297 = vunpack.c.l.b16 %v257
    %v298 = vunpack.c.l.b16 %v258
    %v299 = vunpack.c.l.b16 %v259
    %v300 = vunpack.c.l.b16 %v260
    %v301 = vpack.c.b16 %v286, %v285
    %v302 = vpack.c.b16 %v288, %v287
    %v303 = vpack.c.b16 %v290, %v289
    %v304 = vpack.c.b16 %v292, %v291
    %v305 = vpack.c.b16 %v294, %v293
    %v306 = vpack.c.b16 %v296, %v295
    %v307 = vpack.c.b16 %v298, %v297
    %v308 = vpack.c.b16 %v300, %v299
    %317 = vmatprep.subr.bf16.mxu0 0
    %318 = vmatpush1.bf16.msra.mxu0 %v308
    %319 = vmatprep.subr.bf16.mxu0 0
    %320 = vmatpush1.bf16.msra.mxu0 %v307
    %321 = vmatprep.subr.bf16.mxu0 0
    %322 = vmatpush1.bf16.msra.mxu0 %v306
    %323 = vmatprep.subr.bf16.mxu0 0
    %324 = vmatpush1.bf16.msra.mxu0 %v305
    %325 = vmatprep.subr.bf16.mxu0 0
    %326 = vmatpush1.bf16.msra.mxu0 %v304
    %327 = vmatprep.subr.bf16.mxu0 0
    %328 = vmatpush1.bf16.msra.mxu0 %v303
    %329 = vmatprep.subr.bf16.mxu0 0
    %330 = vmatpush1.bf16.msra.mxu0 %v302
    %331 = vmatprep.subr.bf16.mxu0 0
    %332 = vmatpush1.bf16.msra.mxu0 %v301
    %333 = vmatprep.subr.bf16.mxu0 0
    %334 = vmatpush2.bf16.msra.mxu0 0
    %335 = vmatprep.subr.bf16.mxu0 0
    %336 = vmatpush2.bf16.msra.mxu0 0
    %337 = vmatprep.subr.bf16.mxu0 0
    %338 = vmatpush2.bf16.msra.mxu0 0
    %339 = vmatprep.subr.bf16.mxu0 0
    %340 = vmatpush2.bf16.msra.mxu0 0
    %341 = vmatprep.subr.bf16.mxu0 0
    %342 = vmatpush2.bf16.msra.mxu0 0
    %343 = vmatprep.subr.bf16.mxu0 0
    %344 = vmatpush2.bf16.msra.mxu0 0
    %345 = vmatprep.subr.bf16.mxu0 0
    %346 = vmatpush2.bf16.msra.mxu0 0
    %347 = vmatprep.subr.bf16.mxu0 0
    %348 = vmatpush2.bf16.msra.mxu0 0
    %349 = vmatprep.mubr.bf16.mxu0 0
    %350 = vmatmul.mubr.bf16.gmra.mxu0 %v244
    %v351 = vpop.f32.mrf.mxu0
    %v352 = vadd.f32 %v267, %v351
    %v353 = vpop.f32.mrf.mxu0
    %v354 = vpop.f32.mrf.mxu0
    %v355 = vadd.f32 %v267, %v354
    %v356 = vpop.f32.mrf.mxu0
    %357 = vdwg.mxu0
    %v358 = vmax.f32 %v352, 0.0
    %v359 = vmax.f32 %v355, 0.0
    %v360 = vpack.c.bf16 %v359, %v358
    %s361 = scalar_lea.vmem [#allocation7], 64
    %v362 = vld [vmem:[%s361] sm:$0xf]
    %v363 = vld [vmem:[%s361 + $0x4] sm:$0xf]
    %v364 = vld [vmem:[%s361 + $0x8] sm:$0xf]
    %v365 = vld [vmem:[%s361 + $0xc] sm:$0xf]
    %v366 = vld [vmem:[%s361 + $0x10] sm:$0xf]
    %v367 = vld [vmem:[%s361 + $0x14] sm:$0xf]
    %v368 = vld [vmem:[%s361 + $0x18] sm:$0xf]
    %v369 = vld [vmem:[%s361 + $0x1c] sm:$0xf]
    %v370 = vld [vmem:[%s361 + $0x20] sm:$0xf]
    %v371 = vld [vmem:[%s361 + $0x24] sm:$0xf]
    %v372 = vld [vmem:[%s361 + $0x28] sm:$0xf]
    %v373 = vld [vmem:[%s361 + $0x2c] sm:$0xf]
    %v374 = vld [vmem:[%s361 + $0x30] sm:$0xf]
    %v375 = vld [vmem:[%s361 + $0x34] sm:$0xf]
    %v376 = vld [vmem:[%s361 + $0x38] sm:$0xf]
    %v377 = vld [vmem:[%s361 + $0x3c] sm:$0xf]
    %s378 = scalar_lea.vmem %s3, 2
    %v379 = vld [vmem:[%s378] sm:$0x1]
    %v381 = vlaneseq
    %v382 = vshrl.u32 %v381, 7
    %v383 = vsub.s32 0, %v382
    %v384 = vrot.slane %v379, %v383
    %v402 = vunpack.c.l.b16 %v362
    %v403 = vunpack.c.l.b16 %v363
    %v404 = vunpack.c.l.b16 %v364
    %v405 = vunpack.c.l.b16 %v365
    %v406 = vunpack.c.l.b16 %v366
    %v407 = vunpack.c.l.b16 %v367
    %v408 = vunpack.c.l.b16 %v368
    %v409 = vunpack.c.l.b16 %v369
    %v410 = vunpack.c.l.b16 %v370
    %v411 = vunpack.c.l.b16 %v371
    %v412 = vunpack.c.l.b16 %v372
    %v413 = vunpack.c.l.b16 %v373
    %v414 = vunpack.c.l.b16 %v374
    %v415 = vunpack.c.l.b16 %v375
    %v416 = vunpack.c.l.b16 %v376
    %v417 = vunpack.c.l.b16 %v377
    %v418 = vpack.c.b16 %v403, %v402
    %v419 = vpack.c.b16 %v405, %v404
    %v420 = vpack.c.b16 %v407, %v406
    %v421 = vpack.c.b16 %v409, %v408
    %v422 = vpack.c.b16 %v411, %v410
    %v423 = vpack.c.b16 %v413, %v412
    %v424 = vpack.c.b16 %v415, %v414
    %v425 = vpack.c.b16 %v417, %v416
    %434 = vmatprep.subr.bf16.mxu0 0
    %435 = vmatpush1.bf16.msra.mxu0 %v425
    %436 = vmatprep.subr.bf16.mxu0 0
    %437 = vmatpush1.bf16.msra.mxu0 %v424
    %438 = vmatprep.subr.bf16.mxu0 0
    %439 = vmatpush1.bf16.msra.mxu0 %v423
    %440 = vmatprep.subr.bf16.mxu0 0
    %441 = vmatpush1.bf16.msra.mxu0 %v422
    %442 = vmatprep.subr.bf16.mxu0 0
    %443 = vmatpush1.bf16.msra.mxu0 %v421
    %444 = vmatprep.subr.bf16.mxu0 0
    %445 = vmatpush1.bf16.msra.mxu0 %v420
    %446 = vmatprep.subr.bf16.mxu0 0
    %447 = vmatpush1.bf16.msra.mxu0 %v419
    %448 = vmatprep.subr.bf16.mxu0 0
    %449 = vmatpush1.bf16.msra.mxu0 %v418
    %450 = vmatprep.subr.bf16.mxu0 0
    %451 = vmatpush2.bf16.msra.mxu0 0
    %452 = vmatprep.subr.bf16.mxu0 0
    %453 = vmatpush2.bf16.msra.mxu0 0
    %454 = vmatprep.subr.bf16.mxu0 0
    %455 = vmatpush2.bf16.msra.mxu0 0
    %456 = vmatprep.subr.bf16.mxu0 0
    %457 = vmatpush2.bf16.msra.mxu0 0
    %458 = vmatprep.subr.bf16.mxu0 0
    %459 = vmatpush2.bf16.msra.mxu0 0
    %460 = vmatprep.subr.bf16.mxu0 0
    %461 = vmatpush2.bf16.msra.mxu0 0
    %462 = vmatprep.subr.bf16.mxu0 0
    %463 = vmatpush2.bf16.msra.mxu0 0
    %464 = vmatprep.subr.bf16.mxu0 0
    %465 = vmatpush2.bf16.msra.mxu0 0
    %466 = vmatprep.mubr.bf16.mxu0 0
    %467 = vmatmul.mubr.bf16.gmra.mxu0 %v360
    %v468 = vpop.f32.mrf.mxu0
    %v469 = vadd.f32 %v384, %v468
    %v470 = vpop.f32.mrf.mxu0
    %v471 = vpop.f32.mrf.mxu0
    %v472 = vadd.f32 %v384, %v471
    %v473 = vpop.f32.mrf.mxu0
    %474 = vdwg.mxu0
    %475 = vst [vmem:[#allocation8] sm:$0xff] %v469
    %476 = vst [vmem:[#allocation8 + $0x8] sm:$0xff] %v472
    // Predicated region
    $region30: #{tpu_custom_call.1} parent=1 // pred_check
      _
    $region31: #{tpu_custom_call.1} parent=1 // pred_check_branch
      %478 = sbr.rel (0) target = $region33
    $region32: #{tpu_custom_call.1} parent=1 // pred_region
      %s480 = ssub.s32 256, 256
      %481 = vsyncadd [#allocation4], %s480
      %s482 = sshll.u32 [#allocation8], 4
      %s483 = int_to_ptr.vmem [resolvable:$true] %s482
      %488 = dma.vmem_to_hbm [thread:$0]  %s483, 256, %s4, [#allocation4], 128, 128, 8
    $region33: #{tpu_custom_call.1} parent=1 // pred_fallthru
      _
    // Predicated region
    $region34: #{tpu_custom_call.1} parent=1 // pred_check
      _
    $region35: #{tpu_custom_call.1} parent=1 // pred_check_branch
      %490 = sbr.rel (0) target = $region37
    $region36: #{tpu_custom_call.1} parent=1 // pred_region
      %491 = dma.done [#allocation4], 256
    $region37: #{tpu_custom_call.1} parent=1 // pred_fallthru
      _
    %492 = vsyncpa [#allocation3], 1
    %493 = vsyncpa [#allocation6], 1
    %494 = vsyncpa [#allocation4], 1

</llo_original>
